<compile_context>
chip_gen: v7x
topology: tpu7x:2x2x1
jax: 0.10.0
libtpu: 0.0.40
codegen_flags: <defaults>
</compile_context>

<pallas_src>
import functools

import jax
import jax.numpy as jnp
from jax.experimental import pallas as pl
from jax.experimental.pallas import tpu as pltpu

_LANE = 128


def _l2n_kernel(x_ref, o_ref, *, eps, hw, tile, ragged):
    # x_ref / o_ref: (Nb, C, tile) block in VMEM.
    xf = x_ref[...].astype(jnp.float32)
    if ragged:
        # Zero columns past the logical HW extent of the ragged tail block.
        # Their stores are discarded by Pallas anyway; zeroing just keeps the
        # per-column math clean (no inf/nan from padded garbage reads).
        col = jax.lax.broadcasted_iota(jnp.int32, xf.shape, dimension=2)
        valid = (pl.program_id(1) * tile + col) < hw
        xf = jnp.where(valid, xf, 0.0)
    # Sum of squares over channels, accumulated in f32.
    sumsq = jnp.sum(xf * xf, axis=1, keepdims=True)                # (Nb, 1, tile)
    # One reciprocal per (batch, column); broadcast multiply in f32, single
    # rounding to the output dtype (kernel is HBM-bound -> keep approx=False).
    inv = pl.reciprocal(jnp.sqrt(sumsq) + eps, approx=False)
    o_ref[...] = (xf * inv).astype(o_ref.dtype)


def _vmem_capacity_bytes():
    try:
        return int(pltpu.get_tpu_info().vmem_capacity_bytes)
    except Exception:
        return 128 * 1024 * 1024  # v5e / v6e physical VMEM


def _pick_block(N, C, HW, itemsize):
    """Choose (Nb, tile_hw, vmem_limit_bytes) for blocks of shape (Nb, C, tile_hw)."""
    vmem_cap = _vmem_capacity_bytes()
    # Use at most half of physical VMEM as the scoped limit (32 MiB on v7x,
    # 64 MiB on v5e/v6e); size blocks so 2(in+out) x 2(double-buffer) x block
    # plus the f32 compute temps stay well inside it.
    vmem_limit = min(vmem_cap // 2, 64 * 1024 * 1024)
    block_target = max(512 * 1024, min(4 * 1024 * 1024, vmem_limit // 16))

    hw_lanes = pl.cdiv(HW, _LANE)
    lane_block_bytes = max(1, C * _LANE * itemsize)  # bytes per 128-wide column group
    tile_lanes = max(1, min(hw_lanes, block_target // lane_block_bytes))
    # v7x megacore: keep >= 2 spatial grid steps when there is no batch parallelism.
    if N == 1 and hw_lanes >= 2:
        tile_lanes = min(tile_lanes, pl.cdiv(hw_lanes, 2))
    tile = tile_lanes * _LANE

    # Small C*HW: pack several batch images per block to amortize per-step cost.
    nb = 1
    block_bytes = C * tile * itemsize
    if tile_lanes >= hw_lanes and block_bytes < block_target:
        nb = min(N, max(1, block_target // block_bytes))

    # TODO(synk): extremely large C (C*128*itemsize >> block_target) would need a
    # channel-tiled two-pass reduction; not handled here (fine for CNN-style C).
    return nb, tile, vmem_limit


def l2n(x, eps=1e-12):
    """x: (N, C, H, W) -> x / (||x||_2 over dim=1 + eps), same shape/dtype."""
    N, C, H, W = x.shape
    HW = H * W
    itemsize = jnp.dtype(x.dtype).itemsize
    nb, tile, vmem_limit = _pick_block(N, C, HW, itemsize)
    ragged = (HW % tile) != 0

    x2 = x.reshape(N, C, HW)  # metadata-only reshape: no HBM traffic
    grid = (pl.cdiv(N, nb), pl.cdiv(HW, tile))

    kernel = functools.partial(_l2n_kernel, eps=eps, hw=HW, tile=tile, ragged=ragged)

    out = pl.pallas_call(
        kernel,
        out_shape=jax.ShapeDtypeStruct((N, C, HW), x.dtype),
        grid_spec=pltpu.PrefetchScalarGridSpec(
            num_scalar_prefetch=0,
            grid=grid,
            in_specs=[pl.BlockSpec((nb, C, tile), lambda b, s: (b, 0, s))],
            out_specs=pl.BlockSpec((nb, C, tile), lambda b, s: (b, 0, s)),
        ),
        compiler_params=pltpu.CompilerParams(
            dimension_semantics=("parallel", "parallel"),
            vmem_limit_bytes=vmem_limit,
        ),
    )(x2)

    return out.reshape(N, C, H, W)


def _ref(x, eps=1e-12):
    xf = x.astype(jnp.float32)
    norm = jnp.sqrt(jnp.sum(xf * xf, axis=1, keepdims=True))
    return (xf / (norm + eps)).astype(x.dtype)


if __name__ == "__main__":
    key = jax.random.PRNGKey(0)
    k0, k1, k2 = jax.random.split(key, 3)

    # Main check: small NCHW tensor, HW a multiple of 128.
    x = jax.random.normal(k0, (2, 4, 16, 16), dtype=jnp.float32)
    y = jax.block_until_ready(l2n(x))
    assert y.shape == x.shape and y.dtype == x.dtype
    assert jnp.allclose(y, _ref(x), atol=1e-6, rtol=1e-5)

    # Ragged check: HW not a multiple of 128 (in-kernel tail masking path).
    x2 = jax.random.normal(k1, (1, 3, 7, 7), dtype=jnp.float32)
    y2 = jax.block_until_ready(l2n(x2))
    assert y2.shape == x2.shape and y2.dtype == x2.dtype
    assert jnp.allclose(y2, _ref(x2), atol=1e-6, rtol=1e-5)

    # Multi-step grid + ragged tail (N == 1 so the spatial axis is split).
    x3 = jax.random.normal(k2, (1, 8, 40, 40), dtype=jnp.float32)
    y3 = jax.block_until_ready(l2n(x3))
    assert y3.shape == x3.shape and y3.dtype == x3.dtype
    assert jnp.allclose(y3, _ref(x3), atol=1e-6, rtol=1e-5)

    # bf16 path (f32 accumulation + f32 multiply, single final rounding).
    xb = jax.random.normal(k0, (2, 4, 16, 16), dtype=jnp.bfloat16)
    yb = jax.block_until_ready(l2n(xb))
    assert yb.shape == xb.shape and yb.dtype == xb.dtype
    assert jnp.allclose(yb.astype(jnp.float32), _ref(xb).astype(jnp.float32),
                        atol=1e-2, rtol=1e-2)

    print("KERNEL_OK")
</pallas_src>

<mosaic_0001>
module attributes {stable_mosaic.version = 11 : i64} {
  func.func @_l2n_kernel(%arg0: i32, %arg1: i32, %arg2: memref<2x4x256xf32, #tpu.memory_space<vmem>>, %arg3: memref<2x4x256xf32, #tpu.memory_space<vmem>>) attributes {dimension_semantics = [#tpu.dimension_semantics<parallel>, #tpu.dimension_semantics<parallel>], iteration_bounds = array<i64: 1, 1>, scalar_prefetch = 0 : i64, scratch_operands = 0 : i64, tpu.core_type = #tpu.core_type<tc>, window_params = [{transform_indices = @transform_0, window_bounds = array<i64: 2, 4, 256>}, {transform_indices = @transform_1, window_bounds = array<i64: 2, 4, 256>}]} {
    %c0 = arith.constant 0 : index
    %c0_0 = arith.constant 0 : index
    %c0_1 = arith.constant 0 : index
    %0 = vector.load %arg2[%c0, %c0_0, %c0_1] : memref<2x4x256xf32, #tpu.memory_space<vmem>>, vector<2x4x256xf32>
    %1 = arith.mulf %0, %0 : vector<2x4x256xf32>
    %cst = arith.constant dense<0.000000e+00> : vector<2x256xf32>
    %2 = vector.multi_reduction <add>, %1, %cst [1] : vector<2x4x256xf32> to vector<2x256xf32>
    %3 = vector.shape_cast %2 : vector<2x256xf32> to vector<2x1x256xf32>
    %4 = math.sqrt %3 : vector<2x1x256xf32>
    %cst_2 = arith.constant 9.99999996E-13 : f32
    %5 = vector.broadcast %cst_2 : f32 to vector<2x1x256xf32>
    %6 = arith.addf %4, %5 : vector<2x1x256xf32>
    %7 = tpu.reciprocal %6 : vector<2x1x256xf32> -> vector<2x1x256xf32>
    %8 = vector.broadcast %7 : vector<2x1x256xf32> to vector<2x4x256xf32>
    %9 = arith.mulf %0, %8 : vector<2x4x256xf32>
    %c0_3 = arith.constant 0 : index
    %c0_4 = arith.constant 0 : index
    %c0_5 = arith.constant 0 : index
    %10 = vector.load %arg3[%c0_3, %c0_4, %c0_5] : memref<2x4x256xf32, #tpu.memory_space<vmem>>, vector<2x4x256xf32>
    tpu.vector_store %arg3[%c0_3, %c0_4, %c0_5], %9 {strides = array<i32>} : memref<2x4x256xf32, #tpu.memory_space<vmem>>, vector<2x4x256xf32>,
    return
  }
  func.func @transform_0(%arg0: i32, %arg1: i32) -> (i32, i32, i32) {
    %c0_i32 = arith.constant 0 : i32
    %c0_i32_0 = arith.constant 0 : i32
    return %arg0, %c0_i32, %arg1 : i32, i32, i32
  }
  func.func @transform_1(%arg0: i32, %arg1: i32) -> (i32, i32, i32) {
    %c0_i32 = arith.constant 0 : i32
    %c0_i32_0 = arith.constant 0 : i32
    return %arg0, %c0_i32, %arg1 : i32, i32, i32
  }
}

</mosaic_0001>

<llo_original>
// kernel: tpu_custom_call.1
$region0: #{tpu_custom_call.1}
  #allocation0 [shape = 'u32[]', space=smem, size = 0x4, offset = 0x4, fixed_abs, tag = 'smem constant byte address 0x4 - core index']
  #allocation1 [shape = 'u32[144,128]{1,0:T(1,128)}', space=vmem, size = 0x12000, scoped, tag = 'internal scratch']
  %s0 = inlined_call_operand.hbm [shape: f32[2,4,256], index: 0, kind: input, shape index: {}]
  %s1 = inlined_call_operand.hbm [shape: f32[2,4,256], index: 1, kind: output, shape index: {}]
  %s2 = sld [smem:[#allocation0]]
  $region18: #{tpu_custom_call.1} parent=0
    _
  %s4 = ssub.s32 1, %s2
  %s5 = scalar_select 0, %s4, %s2
  $region1: #{tpu_custom_call.1} parent=0
    #allocation2 [shape = 'u8[8192]{0}', space=vmem, size = 0x2000, scoped, tag = 'input window, operand 0, single buffered']
    #allocation3 [shape = 's32[1]{0}', space=sflag, size = 0x4, scoped, tag = 'scoped memory for tpu_custom_call.1']
    #allocation4 [shape = 's32[1]{0}', space=sflag, size = 0x4, scoped, tag = 'scoped memory for tpu_custom_call.1']
    #allocation5 [shape = 'u8[8192]{0}', space=vmem, size = 0x2000, scoped, tag = 'output window, operand 0, single buffered']
    %6 = vsyncpa [#allocation3], 0
    %7 = vsyncpa [#allocation4], 0
    // Predicated region
    $region2: #{tpu_custom_call.1} parent=1 // pred_check
      _
    $region3: #{tpu_custom_call.1} parent=1 // pred_check_branch
      %9 = sbr.rel (0) target = $region5
    $region4: #{tpu_custom_call.1} parent=1 // pred_region
      %s11 = ssub.s32 256, 256
      %12 = vsyncadd [#allocation3], %s11
      %s13 = sshll.u32 [#allocation2], 4
      %s14 = int_to_ptr.vmem [resolvable:$true] %s13
      %19 = dma.hbm_to_vmem [thread:$0]  %s0, 256, %s14, [#allocation3], 128, 128, 8
    $region5: #{tpu_custom_call.1} parent=1 // pred_fallthru
      _
    // Predicated region
    $region6: #{tpu_custom_call.1} parent=1 // pred_check
      _
    $region7: #{tpu_custom_call.1} parent=1 // pred_check_branch
      %21 = sbr.rel (0) target = $region9
    $region8: #{tpu_custom_call.1} parent=1 // pred_region
      %22 = dma.done [#allocation3], 256
    $region9: #{tpu_custom_call.1} parent=1 // pred_fallthru
      _
    %v23 = vld [vmem:[#allocation2] sm:$0xff]
    %v24 = vld [vmem:[#allocation2 + $0x8] sm:$0xff]
    %v25 = vmul.f32 %v23, %v23
    %v26 = vmul.f32 %v24, %v24
    %v29 = vcombine.high %v25, %v25
    %v30 = vcombine.high %v26, %v26
    %vm33 = vcmask 1043456
    %v34 = vsel %vm33, %v25, 0.0
    %v35 = vrot.slane %v34, 4
    %v36 = vadd.f32 %v34, %v35
    %v37 = vrot.slane %v36, 2
    %v38 = vadd.f32 %v36, %v37
    %v39 = vrot.slane %v38, 1
    %v40 = vadd.f32 %v38, %v39
    %v41 = vsel %vm33, %v29, 0.0
    %v42 = vrot.slane %v41, 4
    %v43 = vadd.f32 %v41, %v42
    %v44 = vrot.slane %v43, 2
    %v45 = vadd.f32 %v43, %v44
    %v46 = vrot.slane %v45, 1
    %v47 = vadd.f32 %v45, %v46
    %v48 = vsel %vm33, %v26, 0.0
    %v49 = vrot.slane %v48, 4
    %v50 = vadd.f32 %v48, %v49
    %v51 = vrot.slane %v50, 2
    %v52 = vadd.f32 %v50, %v51
    %v53 = vrot.slane %v52, 1
    %v54 = vadd.f32 %v52, %v53
    %v55 = vsel %vm33, %v30, 0.0
    %v56 = vrot.slane %v55, 4
    %v57 = vadd.f32 %v55, %v56
    %v58 = vrot.slane %v57, 2
    %v59 = vadd.f32 %v57, %v58
    %v60 = vrot.slane %v59, 1
    %v61 = vadd.f32 %v59, %v60
    %v62 = vrsqrt.pop %v40
    %v63 = vmul.f32 %v40, %v62
    %vm64 = vcmp.eq.f32.partialorder %v40, inf
    %v65 = vsel %vm64, %v40, %v63
    %vm66 = vcmp.eq.f32.partialorder %v40, 0.0
    %v67 = vand.u32 %v40, 2147483648
    %v68 = vsel %vm66, %v67, %v65
    %v69 = vrsqrt.pop %v47
    %v70 = vmul.f32 %v47, %v69
    %vm71 = vcmp.eq.f32.partialorder %v47, inf
    %v72 = vsel %vm71, %v47, %v70
    %vm73 = vcmp.eq.f32.partialorder %v47, 0.0
    %v74 = vand.u32 %v47, 2147483648
    %v75 = vsel %vm73, %v74, %v72
    %v76 = vrsqrt.pop %v54
    %v77 = vmul.f32 %v54, %v76
    %vm78 = vcmp.eq.f32.partialorder %v54, inf
    %v79 = vsel %vm78, %v54, %v77
    %vm80 = vcmp.eq.f32.partialorder %v54, 0.0
    %v81 = vand.u32 %v54, 2147483648
    %v82 = vsel %vm80, %v81, %v79
    %v83 = vrsqrt.pop %v61
    %v84 = vmul.f32 %v61, %v83
    %vm85 = vcmp.eq.f32.partialorder %v61, inf
    %v86 = vsel %vm85, %v61, %v84
    %vm87 = vcmp.eq.f32.partialorder %v61, 0.0
    %v88 = vand.u32 %v61, 2147483648
    %v89 = vsel %vm87, %v88, %v86
    %v90 = vadd.f32 %v68, 1e-12
    %v91 = vadd.f32 %v75, 1e-12
    %v92 = vadd.f32 %v82, 1e-12
    %v93 = vadd.f32 %v89, 1e-12
    %v94 = vrcp.pop %v90
    %v95 = vrcp.pop %v91
    %v96 = vrcp.pop %v92
    %v97 = vrcp.pop %v93
    %v102 = vcombine.low %v94, %v95
    %v103 = vcombine.low %v96, %v97
    %v106 = vmul.f32 %v23, %v102
    %v107 = vmul.f32 %v24, %v103
    %108 = vst [vmem:[#allocation5] sm:$0xff] %v106
    %109 = vst [vmem:[#allocation5 + $0x8] sm:$0xff] %v107
    // Predicated region
    $region10: #{tpu_custom_call.1} parent=1 // pred_check
      _
    $region11: #{tpu_custom_call.1} parent=1 // pred_check_branch
      %111 = sbr.rel (0) target = $region13
    $region12: #{tpu_custom_call.1} parent=1 // pred_region
      %s113 = ssub.s32 256, 256
      %114 = vsyncadd [#allocation4], %s113
      %s115 = sshll.u32 [#allocation5], 4
      %s116 = int_to_ptr.vmem [resolvable:$true] %s115
      %121 = dma.vmem_to_hbm [thread:$0]  %s116, 256, %s1, [#allocation4], 128, 128, 8
    $region13: #{tpu_custom_call.1} parent=1 // pred_fallthru
      _
    // Predicated region
    $region14: #{tpu_custom_call.1} parent=1 // pred_check
      _
    $region15: #{tpu_custom_call.1} parent=1 // pred_check_branch
      %123 = sbr.rel (0) target = $region17
    $region16: #{tpu_custom_call.1} parent=1 // pred_region
      %124 = dma.done [#allocation4], 256
    $region17: #{tpu_custom_call.1} parent=1 // pred_fallthru
      _
    %125 = vsyncpa [#allocation3], 1
    %126 = vsyncpa [#allocation4], 1

</llo_original>
